<compile_context>
chip_gen: v5e
topology: v5e:2x2
jax: 0.10.0
libtpu: 0.0.40
codegen_flags: <defaults>
</compile_context>

<pallas_src>
import functools

import jax
import jax.numpy as jnp
from jax import lax
from jax.experimental import pallas as pl
from jax.experimental.pallas import tpu as pltpu

GN_EPS = 1e-5 * 64            # ln_x = GroupNorm(n_head, n_embd, eps=1e-5*64)


def _round_up(x, m):
    return (x + m - 1) // m * m


@functools.lru_cache(maxsize=1)
def _vmem_limit():
    """Generation-aware scoped-VMEM limit (v7x: 64 MiB physical per TC)."""
    cap = 64 * 1024 * 1024                      # conservative fallback
    try:
        info = pltpu.get_tpu_info()
        cap = int(getattr(info, "vmem_capacity_bytes", cap))
    except Exception:
        pass
    if cap <= 64 * 1024 * 1024:                 # v7x-class: leave compiler headroom
        return 48 * 1024 * 1024
    return min(cap - 32 * 1024 * 1024, 100 * 1024 * 1024)


def _pick_mm_tiles(M, K, n_out, act_b, w_b, out_b, n_act):
    """Budget-driven (tm, tk, tn): prefer big tm (weight reuse), then tn, then tk=K."""
    budget = (3 * _vmem_limit()) // 4

    def vmem(tm, tk, tn):
        ins = n_act * tm * tk * act_b + tk * tn * w_b + (tk + tn) * 4
        outs = tm * tn * out_b
        acc = tm * tn * 4 if tk < K else 0
        return 2 * (ins + outs) + acc           # double-buffered in/out + scratch

    mp8 = _round_up(M, 8)
    tm_opts = [t for t in (1024, 512, 256, 128) if t <= mp8] or [mp8]

    def cands(dim, opts):
        c = [o for o in opts if o < dim and dim % o == 0 and o % 128 == 0]
        c.append(dim)                           # full extent is always legal
        return sorted(set(c), reverse=True)

    tn_opts = cands(n_out, (512, 256, 128))
    tk_opts = cands(K, (2048, 1024, 512, 256, 128))

    for tm in tm_opts:
        for tn in tn_opts:
            for tk in tk_opts:
                if vmem(tm, tk, tn) <= budget:
                    return tm, tk, tn
    return tm_opts[-1], tk_opts[-1], tn_opts[-1]


# --------------------------------------------------------------------------
# Kernel 1: fused token-shift mix (time_maa) + stacked R/K/V/G projections
# --------------------------------------------------------------------------
def _mix_proj_kernel(x_ref, xx_ref, maa_ref, w_ref, *rest, use_bias, single_k):
    idx = 0
    b_ref = None
    if use_bias:
        b_ref = rest[idx]; idx += 1
    o_ref = rest[idx]; idx += 1
    acc_ref = None if single_k else rest[idx]

    # token-shift interpolation in f32 on the VPU, operands cast back to the
    # model dtype so the MXU runs its fast path with f32 accumulation.
    x = x_ref[...].astype(jnp.float32)                    # (tm, tk)
    xx = xx_ref[...].astype(jnp.float32)                  # (tm, tk)
    maa = maa_ref[0].astype(jnp.float32)                  # (1, tk)
    xin = (x + xx * maa).astype(x_ref.dtype)
    part = jnp.dot(xin, w_ref[0], preferred_element_type=jnp.float32)

    if single_k:
        out = part
        if use_bias:
            out = out + b_ref[0].astype(jnp.float32)
        o_ref[0] = out.astype(o_ref.dtype)
    else:
        kk = pl.program_id(3)

        @pl.when(kk == 0)
        def _():
            acc_ref[...] = jnp.zeros_like(acc_ref)

        acc_ref[...] += part

        @pl.when(kk == pl.num_programs(3) - 1)
        def _():
            out = acc_ref[...]
            if use_bias:
                out = out + b_ref[0].astype(jnp.float32)
            o_ref[0] = out.astype(o_ref.dtype)


def _mix_proj(x2, xx2, maa, w_stack, b_stack, out_dtype):
    M, K = x2.shape
    n_out = w_stack.shape[2]
    tm, tk, tn = _pick_mm_tiles(M, K, n_out,
                                x2.dtype.itemsize, w_stack.dtype.itemsize,
                                jnp.dtype(out_dtype).itemsize, n_act=2)
    mp = _round_up(M, tm)
    if mp != M:
        pad = mp - M
        x2 = jnp.pad(x2, ((0, pad), (0, 0)))
        xx2 = jnp.pad(xx2, ((0, pad), (0, 0)))
    single_k = (tk == K)
    use_bias = b_stack is not None
    grid = (4, mp // tm, n_out // tn, K // tk)

    in_specs = [
        pl.BlockSpec((tm, tk), lambda p, i, j, k: (i, k)),          # x
        pl.BlockSpec((tm, tk), lambda p, i, j, k: (i, k)),          # xx
        pl.BlockSpec((1, 1, tk), lambda p, i, j, k: (p, 0, k)),     # time_maa (per proj)
        pl.BlockSpec((1, tk, tn), lambda p, i, j, k: (p, k, j)),    # W^T (per proj)
    ]
    args = [x2, xx2, maa, w_stack]
    if use_bias:
        in_specs.append(pl.BlockSpec((1, 1, tn), lambda p, i, j, k: (p, 0, j)))
        args.append(b_stack)

    scratch = [] if single_k else [pltpu.VMEM((tm, tn), jnp.float32)]
    out = pl.pallas_call(
        functools.partial(_mix_proj_kernel, use_bias=use_bias, single_k=single_k),
        out_shape=jax.ShapeDtypeStruct((4, mp, n_out), out_dtype),
        grid_spec=pltpu.PrefetchScalarGridSpec(
            num_scalar_prefetch=0,
            grid=grid,
            in_specs=in_specs,
            out_specs=pl.BlockSpec((1, tm, tn), lambda p, i, j, k: (p, i, j)),
            scratch_shapes=scratch),
        compiler_params=pltpu.CompilerParams(
            dimension_semantics=("parallel", "parallel", "parallel", "arbitrary"),
            vmem_limit_bytes=_vmem_limit()),
    )(*args)
    return out[:, :M, :]


# --------------------------------------------------------------------------
# Kernel 2: head-batched chunked WKV recurrence fused with GroupNorm + SiLU gate
# --------------------------------------------------------------------------
def _wkv_gn_gate_kernel(r_ref, k_ref, v_ref, g_ref, wm_ref, wk_ref, wb_ref,
                        ws_ref, gnw_ref, gnb_ref, o_ref, state_ref,
                        *, hb, n, eps):
    c = pl.program_id(2)

    @pl.when(c == 0)
    def _():
        state_ref[...] = jnp.zeros_like(state_ref)

    dt = r_ref.dtype
    outs = []
    for h in range(hb):
        sl = pl.ds(h * n, n)
        r_h = r_ref[0, :, sl]                    # (q, N) model dtype
        k_h = k_ref[0, :, sl]                    # (q, N)
        v_h = v_ref[0, :, sl]                    # (q, N)
        wm_h = wm_ref[h]                         # (q, q) f32 intra-chunk decay (u on diag)
        wk_h = wk_ref[h]                         # (q, 1) f32  w^(Q-1-j)
        wb_h = wb_ref[h]                         # (q, 1) f32  w^i
        ws_h = ws_ref[h]                         # (1, 1) f32  w^Q
        state = state_ref[h]                     # (N, N) f32 carried state

        # intra-chunk: (r_i . k_j) * decay @ v   (MXU, f32 accumulation)
        a = lax.dot_general(r_h, k_h, (((1,), (1,)), ((), ())),
                            preferred_element_type=jnp.float32)       # (q, q)
        y = jnp.dot((a * wm_h).astype(dt), v_h,
                    preferred_element_type=jnp.float32)                # (q, N)
        # inter-chunk contribution from the carried state
        y = y + jnp.dot(r_h, state.astype(dt),
                        preferred_element_type=jnp.float32) * wb_h
        # state <- w^Q * state + (k * w^(Q-1-j))^T @ v
        kw = (k_h.astype(jnp.float32) * wk_h).astype(dt)
        kv = lax.dot_general(kw, v_h, (((0,), (0,)), ((), ())),
                             preferred_element_type=jnp.float32)       # (N, N)
        state_ref[h] = ws_h * state + kv

        # fused GroupNorm: this head's N channels are exactly one group
        mean = jnp.mean(y, axis=-1, keepdims=True)
        yc = y - mean
        var = jnp.mean(yc * yc, axis=-1, keepdims=True)
        yn = yc * lax.rsqrt(var + eps)
        yn = yn * gnw_ref[:, sl].astype(jnp.float32) \
            + gnb_ref[:, sl].astype(jnp.float32)
        # fused SiLU gate
        g_h = g_ref[0, :, sl].astype(jnp.float32)
        outs.append(yn * (g_h * jax.nn.sigmoid(g_h)))

    # single lane-dense (q, Hb*N) store directly in (B, T, C) layout
    if hb > 1:
        o_ref[0] = jnp.concatenate(outs, axis=-1).astype(o_ref.dtype)
    else:
        o_ref[0] = outs[0].astype(o_ref.dtype)


def _pick_head_group(H, N, B):
    """Heads per grid step: big enough for lane-dense blocks, small enough to
    keep >= 2 parallel grid units for 2-TensorCore (v7x) chips when B == 1."""
    prefs = [c for c in (8, 4, 2) if c <= H and H % c == 0] + [H, 1]
    for c in prefs:
        cg = c * N
        if cg % 128 != 0 and cg != H * N:
            continue
        if B == 1 and H > 1 and H // c < 2:
            continue
        return c
    return H


def _wkv_gn_gate(r3, k3, v3, g3, wmat, wk, wb, ws, gn_w, gn_b, q, n_head, out_dtype):
    B, T, C = r3.shape
    H = n_head
    N = C // H
    Hb = _pick_head_group(H, N, B)
    HG = H // Hb
    Cg = Hb * N
    nchunk = T // q

    tok_spec = pl.BlockSpec((1, q, Cg), lambda b, hg, c: (b, c, hg))
    wm_spec = pl.BlockSpec((Hb, q, q), lambda b, hg, c: (hg, 0, 0))
    wv_spec = pl.BlockSpec((Hb, q, 1), lambda b, hg, c: (hg, 0, 0))
    wsc_spec = pl.BlockSpec((Hb, 1, 1), lambda b, hg, c: (hg, 0, 0))
    gn_spec = pl.BlockSpec((1, Cg), lambda b, hg, c: (0, hg))

    return pl.pallas_call(
        functools.partial(_wkv_gn_gate_kernel, hb=Hb, n=N, eps=GN_EPS),
        out_shape=jax.ShapeDtypeStruct((B, T, C), out_dtype),
        grid_spec=pltpu.PrefetchScalarGridSpec(
            num_scalar_prefetch=0,
            grid=(B, HG, nchunk),                    # chunk axis innermost
            in_specs=[tok_spec, tok_spec, tok_spec, tok_spec,
                      wm_spec, wv_spec, wv_spec, wsc_spec,
                      gn_spec, gn_spec],
            out_specs=tok_spec,
            scratch_shapes=[pltpu.VMEM((Hb, N, N), jnp.float32)]),
        compiler_params=pltpu.CompilerParams(
            dimension_semantics=("parallel", "parallel", "arbitrary"),
            vmem_limit_bytes=_vmem_limit()),
    )(r3, k3, v3, g3, wmat, wk, wb, ws,
      gn_w.reshape(1, C), gn_b.reshape(1, C))


# --------------------------------------------------------------------------
# Kernel 3: tiled output projection
# --------------------------------------------------------------------------
def _out_proj_kernel(x_ref, w_ref, *rest, use_bias, single_k):
    idx = 0
    b_ref = None
    if use_bias:
        b_ref = rest[idx]; idx += 1
    o_ref = rest[idx]; idx += 1
    acc_ref = None if single_k else rest[idx]

    part = jnp.dot(x_ref[...], w_ref[...], preferred_element_type=jnp.float32)

    if single_k:
        out = part
        if use_bias:
            out = out + b_ref[...].astype(jnp.float32)
        o_ref[...] = out.astype(o_ref.dtype)
    else:
        kk = pl.program_id(2)

        @pl.when(kk == 0)
        def _():
            acc_ref[...] = jnp.zeros_like(acc_ref)

        acc_ref[...] += part

        @pl.when(kk == pl.num_programs(2) - 1)
        def _():
            out = acc_ref[...]
            if use_bias:
                out = out + b_ref[...].astype(jnp.float32)
            o_ref[...] = out.astype(o_ref.dtype)


def _linear(x2, w_t, b, out_dtype):
    M, K = x2.shape
    n_out = w_t.shape[1]
    tm, tk, tn = _pick_mm_tiles(M, K, n_out,
                                x2.dtype.itemsize, w_t.dtype.itemsize,
                                jnp.dtype(out_dtype).itemsize, n_act=1)
    mp = _round_up(M, tm)
    if mp != M:
        x2 = jnp.pad(x2, ((0, mp - M), (0, 0)))
    single_k = (tk == K)
    use_bias = b is not None
    grid = (mp // tm, n_out // tn, K // tk)

    in_specs = [pl.BlockSpec((tm, tk), lambda i, j, k: (i, k)),
                pl.BlockSpec((tk, tn), lambda i, j, k: (k, j))]
    args = [x2, w_t]
    if use_bias:
        in_specs.append(pl.BlockSpec((1, tn), lambda i, j, k: (0, j)))
        args.append(b.reshape(1, n_out))

    scratch = [] if single_k else [pltpu.VMEM((tm, tn), jnp.float32)]
    out = pl.pallas_call(
        functools.partial(_out_proj_kernel, use_bias=use_bias, single_k=single_k),
        out_shape=jax.ShapeDtypeStruct((mp, n_out), out_dtype),
        grid_spec=pltpu.PrefetchScalarGridSpec(
            num_scalar_prefetch=0,
            grid=grid,
            in_specs=in_specs,
            out_specs=pl.BlockSpec((tm, tn), lambda i, j, k: (i, j)),
            scratch_shapes=scratch),
        compiler_params=pltpu.CompilerParams(
            dimension_semantics=("parallel", "parallel", "arbitrary"),
            vmem_limit_bytes=_vmem_limit()),
    )(*args)
    return out[:M]


# --------------------------------------------------------------------------
# Per-head decay tensors (mirrors the PyTorch construction exactly)
# --------------------------------------------------------------------------
def _build_chunk_decay(time_decay, time_faaaa, q):
    H = time_decay.shape[0]
    w = jnp.exp(-jnp.exp(time_decay.astype(jnp.float32)))      # (H, 1)
    u = time_faaaa.astype(jnp.float32)                          # (H, 1)
    ws = w ** q                                                  # (H, 1)
    ind = jnp.arange(q - 1, -1, -1, dtype=jnp.float32)           # (Q,)
    w_rep = jnp.tile(w, (1, q)) ** ind[None, :]                  # (H, Q): w^(Q-1-j)
    wk = w_rep                                                   # (H, Q)
    wb = jnp.flip(w_rep, axis=1)                                 # (H, Q): w^i

    wmat = jnp.concatenate([w_rep[:, 1:], u], axis=1)            # (H, Q)
    wmat = jnp.pad(wmat, ((0, 0), (0, q)))                       # (H, 2Q)
    wmat = jnp.tile(wmat, (1, q))                                # (H, 2Q*Q)
    wmat = wmat[:, :-q].reshape(H, q, 2 * q - 1)
    wmat = wmat[:, :, q - 1:]                                    # (H, Q, Q)
    return wmat, wk, wb, ws


def _chunk_size(T):
    # q is a tunable (sweep {128, 256} per generation); q=128 halves the
    # intra-chunk FLOPs vs 256 and exactly fills a 128-wide MXU pass.
    if T % 128 == 0:
        return 128
    return T


# --------------------------------------------------------------------------
# Parameter prep (hoisted out of the hot path) + full forward (Pallas path)
# --------------------------------------------------------------------------
def prepare_rwkv_params(params, use_bias=True):
    C = params["w_r"].shape[0]
    p = dict(params)
    p["maa_stack"] = jnp.stack([params["time_maa_r"], params["time_maa_k"],
                                params["time_maa_v"], params["time_maa_g"]],
                               axis=0).reshape(4, 1, C)
    p["w_stack_t"] = jnp.stack([params["w_r"].T, params["w_k"].T,
                                params["w_v"].T, params["w_g"].T], axis=0)
    p["w_o_t"] = params["w_o"].T
    if use_bias:
        p["b_stack"] = jnp.stack([params["b_r"], params["b_k"],
                                  params["b_v"], params["b_g"]],
                                 axis=0).reshape(4, 1, C)
    return p


def rwkv_timemix_forward(x, params, n_head, use_bias=True):
    B, T, C = x.shape
    H = n_head
    assert C % H == 0
    dtype = x.dtype
    q = _chunk_size(T)
    assert T % q == 0

    if "w_stack_t" not in params:
        params = prepare_rwkv_params(params, use_bias)

    # token shift: xx = shift(x) - x  (cheap XLA concat)
    x_shift = jnp.concatenate([jnp.zeros_like(x[:, :1]), x[:, :-1]], axis=1)
    xx = x_shift - x

    M = B * T
    rkvg = _mix_proj(x.reshape(M, C), xx.reshape(M, C),
                     params["maa_stack"], params["w_stack_t"],
                     params["b_stack"] if use_bias else None, dtype)    # (4, M, C)

    # r/k/v/g stay in (B, T, C) layout: no HBM transposes; the WKV kernel's
    # BlockSpecs pick the per-(batch, head-group, chunk) slabs directly.
    r3 = rkvg[0].reshape(B, T, C)
    k3 = rkvg[1].reshape(B, T, C)
    v3 = rkvg[2].reshape(B, T, C)
    g3 = rkvg[3].reshape(B, T, C)                                       # pre-SiLU gate

    wmat, wk2, wb2, ws2 = _build_chunk_decay(params["time_decay"],
                                             params["time_faaaa"], q)
    gated = _wkv_gn_gate(r3, k3, v3, g3, wmat,
                         wk2.reshape(H, q, 1), wb2.reshape(H, q, 1),
                         ws2.reshape(H, 1, 1),
                         params["gn_w"], params["gn_b"], q, H, dtype)   # (B, T, C)

    out = _linear(gated.reshape(M, C), params["w_o_t"],
                  params["b_o"] if use_bias else None, dtype)
    # TODO(synk): dropout omitted (identity for inference / p=0).
    return out.reshape(B, T, C)


# --------------------------------------------------------------------------
# Pure-JAX reference (direct port of the PyTorch forward)
# --------------------------------------------------------------------------
def rwkv_timemix_reference(x, params, n_head, use_bias=True):
    B, T, C = x.shape
    H = n_head
    N = C // H
    q = _chunk_size(T)

    x_shift = jnp.concatenate([jnp.zeros_like(x[:, :1]), x[:, :-1]], axis=1)
    xx = x_shift - x
    xk = x + xx * params["time_maa_k"]
    xv = x + xx * params["time_maa_v"]
    xr = x + xx * params["time_maa_r"]
    xg = x + xx * params["time_maa_g"]

    def linear(inp, w, b):
        y = inp @ w.T
        if use_bias:
            y = y + b
        return y

    r = linear(xr, params["w_r"], params.get("b_r")).reshape(B, T, H, N).transpose(0, 2, 1, 3)
    k = linear(xk, params["w_k"], params.get("b_k")).reshape(B, T, H, N).transpose(0, 2, 3, 1)
    v = linear(xv, params["w_v"], params.get("b_v")).reshape(B, T, H, N).transpose(0, 2, 1, 3)
    g = jax.nn.silu(linear(xg, params["w_g"], params.get("b_g")))

    wmat, wk2, wb2, ws2 = _build_chunk_decay(params["time_decay"],
                                             params["time_faaaa"], q)
    wmat4 = wmat[None]
    wk4 = wk2.reshape(1, H, 1, q)
    wb4 = wb2.reshape(1, H, q, 1)
    ws4 = ws2.reshape(1, H, 1, 1)

    state = jnp.zeros((B, H, N, N), dtype=jnp.float32)
    ys = []
    for i in range(T // q):
        rr = r[:, :, i * q:(i + 1) * q, :]
        kk = k[:, :, :, i * q:(i + 1) * q]
        vv = v[:, :, i * q:(i + 1) * q, :]
        ys.append((rr @ kk * wmat4) @ vv + (rr @ state) * wb4)
        state = ws4 * state + (kk * wk4) @ vv
    y = jnp.concatenate(ys, axis=2)                          # (B,H,T,N)
    y = y.transpose(0, 2, 1, 3).reshape(B * T, C)

    yg = y.reshape(B * T, H, N)
    mean = yg.mean(axis=-1, keepdims=True)
    var = ((yg - mean) ** 2).mean(axis=-1, keepdims=True)
    yn = (yg - mean) / jnp.sqrt(var + GN_EPS)
    yn = yn.reshape(B * T, C) * params["gn_w"] + params["gn_b"]

    y = yn.reshape(B, T, C) * g
    out = linear(y, params["w_o"], params.get("b_o"))
    return out


if __name__ == "__main__":
    jax.config.update("jax_default_matmul_precision", "highest")

    key = jax.random.PRNGKey(0)
    B, T, C = 2, 8, 32
    n_head = 2
    n_layer = 4
    layer_id = 1
    use_bias = True
    N = C // n_head

    # Deterministic parameter init mirroring the PyTorch module's __init__.
    ratio_0_to_1 = layer_id / (n_layer - 1)
    ratio_1_to_almost0 = 1.0 - layer_id / n_layer
    ddd = jnp.arange(C, dtype=jnp.float32) / C
    time_maa_k = 1.0 - ddd ** ratio_1_to_almost0
    time_maa_v = 1.0 - (ddd ** ratio_1_to_almost0 + 0.3 * ratio_0_to_1)
    time_maa_r = 1.0 - ddd ** (0.5 * ratio_1_to_almost0)
    time_maa_g = 1.0 - ddd ** (0.5 * ratio_1_to_almost0)
    hh = jnp.arange(n_head, dtype=jnp.float32)
    decay_speed = -6.0 + 5.0 * (hh / (n_head - 1)) ** (0.7 + 1.3 * ratio_0_to_1)
    time_decay = decay_speed[:, None]                          # (H, 1)
    time_faaaa = (ratio_0_to_1 * (1.0 - hh / (n_head - 1)))[:, None]

    keys = jax.random.split(key, 11)

    def init_w(kk):
        return jax.random.normal(kk, (C, C), jnp.float32) * 0.1

    def init_b(kk):
        return jax.random.normal(kk, (C,), jnp.float32) * 0.1

    params = {
        "time_maa_k": time_maa_k, "time_maa_v": time_maa_v,
        "time_maa_r": time_maa_r, "time_maa_g": time_maa_g,
        "time_decay": time_decay, "time_faaaa": time_faaaa,
        "w_r": init_w(keys[0]), "b_r": init_b(keys[1]),
        "w_k": init_w(keys[2]), "b_k": init_b(keys[3]),
        "w_v": init_w(keys[4]), "b_v": init_b(keys[5]),
        "w_g": init_w(keys[6]), "b_g": init_b(keys[7]),
        "w_o": init_w(keys[8]), "b_o": init_b(keys[9]),
        "gn_w": jnp.ones((C,), jnp.float32),
        "gn_b": jnp.zeros((C,), jnp.float32),
    }

    x = jax.random.normal(keys[10], (B, T, C), jnp.float32)

    prepped = prepare_rwkv_params(params, use_bias=use_bias)   # hoisted weight prep
    out = rwkv_timemix_forward(x, prepped, n_head, use_bias=use_bias)
    jax.block_until_ready(out)
    assert out.shape == (B, T, C)

    ref = rwkv_timemix_reference(x, params, n_head, use_bias=use_bias)
    max_diff = float(jnp.max(jnp.abs(out - ref)))
    assert jnp.allclose(out, ref, atol=2e-4, rtol=2e-3), f"max_diff={max_diff}"

    print("KERNEL_OK")
</pallas_src>

<mosaic_0001>
module attributes {stable_mosaic.version = 11 : i64} {
  func.func @_mix_proj_kernel(%arg0: i32, %arg1: i32, %arg2: i32, %arg3: i32, %arg4: memref<16x32xf32, #tpu.memory_space<vmem>>, %arg5: memref<16x32xf32, #tpu.memory_space<vmem>>, %arg6: memref<1x1x32xf32, #tpu.memory_space<vmem>>, %arg7: memref<1x32x32xf32, #tpu.memory_space<vmem>>, %arg8: memref<1x1x32xf32, #tpu.memory_space<vmem>>, %arg9: memref<1x16x32xf32, #tpu.memory_space<vmem>>) attributes {dimension_semantics = [#tpu.dimension_semantics<parallel>, #tpu.dimension_semantics<parallel>, #tpu.dimension_semantics<parallel>, #tpu.dimension_semantics<arbitrary>], iteration_bounds = array<i64: 4, 1, 1, 1>, scalar_prefetch = 0 : i64, scratch_operands = 0 : i64, tpu.core_type = #tpu.core_type<tc>, window_params = [{transform_indices = @transform_0, window_bounds = array<i64: 16, 32>}, {transform_indices = @transform_1, window_bounds = array<i64: 16, 32>}, {transform_indices = @transform_2, window_bounds = array<i64: 1, 1, 32>}, {transform_indices = @transform_3, window_bounds = array<i64: 1, 32, 32>}, {transform_indices = @transform_4, window_bounds = array<i64: 1, 1, 32>}, {transform_indices = @transform_5, window_bounds = array<i64: 1, 16, 32>}]} {
    %c0 = arith.constant 0 : index
    %c0_0 = arith.constant 0 : index
    %0 = vector.load %arg4[%c0, %c0_0] : memref<16x32xf32, #tpu.memory_space<vmem>>, vector<16x32xf32>
    %c0_1 = arith.constant 0 : index
    %c0_2 = arith.constant 0 : index
    %1 = vector.load %arg5[%c0_1, %c0_2] : memref<16x32xf32, #tpu.memory_space<vmem>>, vector<16x32xf32>
    %c0_3 = arith.constant 0 : index
    %c0_4 = arith.constant 0 : index
    %c0_5 = arith.constant 0 : index
    %2 = vector.load %arg6[%c0_3, %c0_4, %c0_5] : memref<1x1x32xf32, #tpu.memory_space<vmem>>, vector<1x1x32xf32>
    %3 = vector.shape_cast %2 : vector<1x1x32xf32> to vector<1x32xf32>
    %4 = vector.broadcast %3 : vector<1x32xf32> to vector<16x32xf32>
    %5 = arith.mulf %1, %4 : vector<16x32xf32>
    %6 = arith.addf %0, %5 : vector<16x32xf32>
    %c0_6 = arith.constant 0 : index
    %c0_7 = arith.constant 0 : index
    %c0_8 = arith.constant 0 : index
    %7 = vector.load %arg7[%c0_6, %c0_7, %c0_8] : memref<1x32x32xf32, #tpu.memory_space<vmem>>, vector<1x32x32xf32>
    %8 = vector.shape_cast %7 : vector<1x32x32xf32> to vector<32x32xf32>
    %cst = arith.constant dense<0.000000e+00> : vector<16x32xf32>
    %9 = tpu.matmul %6, %8, %cst {dimension_numbers = #tpu.dot_dimension_numbers<[1], [0], [0], [1], [0, 0, 1, 1], [], []>, precision = #tpu.contract_precision<fp32>} : vector<16x32xf32>, vector<32x32xf32>, vector<16x32xf32> -> vector<16x32xf32>
    %c0_9 = arith.constant 0 : index
    %c0_10 = arith.constant 0 : index
    %c0_11 = arith.constant 0 : index
    %10 = vector.load %arg8[%c0_9, %c0_10, %c0_11] : memref<1x1x32xf32, #tpu.memory_space<vmem>>, vector<1x1x32xf32>
    %11 = vector.shape_cast %10 : vector<1x1x32xf32> to vector<1x32xf32>
    %12 = vector.broadcast %11 : vector<1x32xf32> to vector<16x32xf32>
    %13 = arith.addf %9, %12 : vector<16x32xf32>
    %c0_12 = arith.constant 0 : index
    %c0_13 = arith.constant 0 : index
    %c0_14 = arith.constant 0 : index
    %14 = vector.load %arg9[%c0_12, %c0_13, %c0_14] : memref<1x16x32xf32, #tpu.memory_space<vmem>>, vector<1x16x32xf32>
    %15 = vector.shape_cast %14 : vector<1x16x32xf32> to vector<16x32xf32>
    %16 = vector.shape_cast %13 : vector<16x32xf32> to vector<1x16x32xf32>
    tpu.vector_store %arg9[%c0_12, %c0_13, %c0_14], %16 {strides = array<i32>} : memref<1x16x32xf32, #tpu.memory_space<vmem>>, vector<1x16x32xf32>,
    return
  }
  func.func @transform_0(%arg0: i32, %arg1: i32, %arg2: i32, %arg3: i32) -> (i32, i32) {
    %c0_i32 = arith.constant 0 : i32
    return %arg1, %arg3 : i32, i32
  }
  func.func @transform_1(%arg0: i32, %arg1: i32, %arg2: i32, %arg3: i32) -> (i32, i32) {
    %c0_i32 = arith.constant 0 : i32
    return %arg1, %arg3 : i32, i32
  }
  func.func @transform_2(%arg0: i32, %arg1: i32, %arg2: i32, %arg3: i32) -> (i32, i32, i32) {
    %c0_i32 = arith.constant 0 : i32
    %c0_i32_0 = arith.constant 0 : i32
    return %arg0, %c0_i32, %arg3 : i32, i32, i32
  }
  func.func @transform_3(%arg0: i32, %arg1: i32, %arg2: i32, %arg3: i32) -> (i32, i32, i32) {
    %c0_i32 = arith.constant 0 : i32
    return %arg0, %arg3, %arg2 : i32, i32, i32
  }
  func.func @transform_4(%arg0: i32, %arg1: i32, %arg2: i32, %arg3: i32) -> (i32, i32, i32) {
    %c0_i32 = arith.constant 0 : i32
    %c0_i32_0 = arith.constant 0 : i32
    return %arg0, %c0_i32, %arg2 : i32, i32, i32
  }
  func.func @transform_5(%arg0: i32, %arg1: i32, %arg2: i32, %arg3: i32) -> (i32, i32, i32) {
    %c0_i32 = arith.constant 0 : i32
    return %arg0, %arg1, %arg2 : i32, i32, i32
  }
}

</mosaic_0001>

<llo_original>
// kernel: tpu_custom_call.1
$region0: #{tpu_custom_call.1}
  #allocation0 [shape = 'u32[]', space=smem, size = 0x4, offset = 0x4, fixed_abs, tag = 'smem constant byte address 0x4 - core index']
  #allocation1 [shape = 'u32[72,128]{1,0:T(1,128)}', space=vmem, size = 0x9000, scoped, tag = 'internal scratch']
  %s0 = inlined_call_operand.hbm [shape: f32[16,32], index: 0, kind: input, shape index: {}]
  %s1 = inlined_call_operand.hbm [shape: f32[16,32], index: 1, kind: input, shape index: {}]
  %s2 = inlined_call_operand.hbm [shape: f32[4,1,32], index: 2, kind: input, shape index: {}]
  %s3 = inlined_call_operand.hbm [shape: f32[4,32,32], index: 3, kind: input, shape index: {}]
  %s4 = inlined_call_operand.hbm [shape: f32[4,1,32], index: 4, kind: input, shape index: {}]
  %s5 = inlined_call_operand.hbm [shape: f32[4,16,32], index: 5, kind: output, shape index: {}]
  %s6 = sld [smem:[#allocation0]]
  $region73: #{tpu_custom_call.1} parent=0
    _
  %s8 = ssub.s32 1, %s6
  %s9 = scalar_select 0, %s8, %s6
  $region1: #{tpu_custom_call.1} parent=0
    #allocation2 [shape = 'u8[8192]{0}', space=vmem, size = 0x2000, scoped, tag = 'input window, operand 0, single buffered']
    #allocation3 [shape = 's32[2]{0}', space=sflag, size = 0x8, scoped, tag = 'scoped memory for tpu_custom_call.1']
    #allocation4 [shape = 's32[2]{0}', space=sflag, size = 0x8, scoped, tag = 'scoped memory for tpu_custom_call.1']
    #allocation5 [shape = 'u8[8192]{0}', space=vmem, size = 0x2000, scoped, tag = 'input window, operand 1, single buffered']
    #allocation6 [shape = 's32[1]{0}', space=sflag, size = 0x4, scoped, tag = 'scoped memory for tpu_custom_call.1']
    #allocation7 [shape = 'u8[1024]{0}', space=vmem, size = 0x400, scoped, tag = 'input window, operand 2']
    #allocation8 [shape = 'u8[32768]{0}', space=vmem, size = 0x8000, scoped, tag = 'input window, operand 3']
    #allocation9 [shape = 'u8[1024]{0}', space=vmem, size = 0x400, scoped, tag = 'input window, operand 4']
    #allocation10 [shape = 'u8[16384]{0}', space=vmem, size = 0x4000, scoped, tag = 'output window, operand 0']
    %10 = vsyncpa [#allocation3], 0
    %11 = vsyncpa [#allocation6], 0
    %12 = vsyncpa [#allocation4], 0
    %s13 = scalar_lea.sflag [#allocation4], 1
    %14 = vsyncpa %s13, 0
    loop: start=0, step=1, limit=6
    $region2: #{tpu_custom_call.1} parent=1 // loop_pre_header
      _
    $region3: #{tpu_custom_call.1} parent=1 // loop_header
      %s16 = sphi 0, %s20
      %p17 = scmp.ge.s32.totalorder %s16, 6
      %s23 = sphi 0, %s49
      %s24 = sphi 0, %s45
      %s25 = sphi 0, %s41
      %s26 = sphi 0, %s37
      %s27 = sphi 0, %s23
      %s28 = sphi 0, %s24
      %s29 = sphi 0, %s25
      %s30 = sphi 0, %s26
      %s31 = sphi 0, %s27
      %s32 = sphi 0, %s28
      %s33 = sphi 0, %s29
      %s34 = sphi 0, %s30
      %s54 = sphi 0, %s56
      %s57 = sphi 0, %s54
      %s58 = sphi 0, %s57
      %s74 = sphi 0, %s58
      %s82 = sphi 0, %s84
      %s85 = sphi 0, %s82
      %s86 = sphi 0, %s85
      %s102 = sphi 0, %s86
      %s110 = sphi 0, %s112
      %s113 = sphi 0, %s110
      %s114 = sphi 0, %s113
      %s130 = sphi 0, %s114
      %s140 = sphi 0, %s142
      %s143 = sphi 0, %s140
      %s144 = sphi 0, %s143
      %s160 = sphi 0, %s144
      %s168 = sphi 0, %s170
      %s171 = sphi 0, %s168
      %s172 = sphi 0, %s171
      %s188 = sphi 0, %s172
      %s198 = sphi 0, %s200
      %s201 = sphi 0, %s198
      %s202 = sphi 0, %s201
      %s218 = sphi 0, %s202
    $region4: #{tpu_custom_call.1} parent=1 // loop_header_branch
      %19 = sbr.rel (%p17) target = $region8
    $region5: #{tpu_custom_call.1} parent=1 // loop_body
      %s21 = ssub.s32 %s16, 1
      %s22 = ssub.s32 %s16, 2
      %s35 = sadd.s32 1, %s26
      %p36 = scmp.ge.s32.totalorder %s35, 1
      %s37 = scalar_select %p36, 0, %s35
      %s38 = sadd.s32 1, %s25
      %s39 = scalar_select %p36, %s38, %s25
      %p40 = scmp.ge.s32.totalorder %s39, 1
      %s41 = scalar_select %p40, 0, %s39
      %s42 = sadd.s32 1, %s24
      %s43 = scalar_select %p40, %s42, %s24
      %p44 = scmp.ge.s32.totalorder %s43, 1
      %s45 = scalar_select %p44, 0, %s43
      %s46 = sadd.s32 1, %s23
      %s47 = scalar_select %p44, %s46, %s23
      %p48 = scmp.ge.s32.totalorder %s47, 4
      %s49 = scalar_select %p48, 0, %s47
      %s50 = ssub.s32 %s24, %s45
      %s51 = ssub.s32 %s26, %s37
      %s52 = sor.u32 %s50, %s51
      %p53 = scmp.eq.s32.totalorder %s52, 0
      %s55 = sadd.s32 %s54, 1
      %s56 = scalar_select %p53, %s54, %s55
      %p59 = pneg %p53
      %p60 = scmp.eq.s32.totalorder %s16, 3
      %p61 = por %p59, %p60
      %p62 = scmp.ne.s32.totalorder %s54, %s57
      %p63 = scmp.eq.s32.totalorder %s16, 0
      %p64 = por %p62, %p63
      %p65 = scmp.ne.s32.totalorder %s54, %s57
      %p66 = scmp.eq.s32.totalorder %s21, 3
      %p67 = por %p65, %p66
      %p68 = scmp.ne.s32.totalorder %s57, %s58
      %p69 = scmp.eq.s32.totalorder %s21, 0
      %p70 = por %p68, %p69
      %p71 = scmp.ne.s32.totalorder %s57, %s58
      %p72 = scmp.eq.s32.totalorder %s22, 3
      %p73 = por %p71, %p72
      %p75 = scmp.ne.s32.totalorder %s58, %s74
      %p76 = scmp.eq.s32.totalorder %s22, 0
      %p77 = por %p75, %p76
      %s78 = ssub.s32 %s24, %s45
      %s79 = ssub.s32 %s26, %s37
      %s80 = sor.u32 %s78, %s79
      %p81 = scmp.eq.s32.totalorder %s80, 0
      %s83 = sadd.s32 %s82, 1
      %s84 = scalar_select %p81, %s82, %s83
      %p87 = pneg %p81
      %p88 = scmp.eq.s32.totalorder %s16, 3
      %p89 = por %p87, %p88
      %p90 = scmp.ne.s32.totalorder %s82, %s85
      %p91 = scmp.eq.s32.totalorder %s16, 0
      %p92 = por %p90, %p91
      %p93 = scmp.ne.s32.totalorder %s82, %s85
      %p94 = scmp.eq.s32.totalorder %s21, 3
      %p95 = por %p93, %p94
      %p96 = scmp.ne.s32.totalorder %s85, %s86
      %p97 = scmp.eq.s32.totalorder %s21, 0
      %p98 = por %p96, %p97
      %p99 = scmp.ne.s32.totalorder %s85, %s86
      %p100 = scmp.eq.s32.totalorder %s22, 3
      %p101 = por %p99, %p100
      %p103 = scmp.ne.s32.totalorder %s86, %s102
      %p104 = scmp.eq.s32.totalorder %s22, 0
      %p105 = por %p103, %p104
      %s106 = ssub.s32 %s23, %s49
      %s107 = ssub.s32 %s26, %s37
      %s108 = sor.u32 %s106, %s107
      %p109 = scmp.eq.s32.totalorder %s108, 0
      %s111 = sadd.s32 %s110, 1
      %s112 = scalar_select %p109, %s110, %s111
      %p115 = pneg %p109
      %p116 = scmp.eq.s32.totalorder %s16, 3
      %p117 = por %p115, %p116
      %p118 = scmp.ne.s32.totalorder %s110, %s113
      %p119 = scmp.eq.s32.totalorder %s16, 0
      %p120 = por %p118, %p119
      %p121 = scmp.ne.s32.totalorder %s110, %s113
      %p122 = scmp.eq.s32.totalorder %s21, 3
      %p123 = por %p121, %p122
      %p124 = scmp.ne.s32.totalorder %s113, %s114
      %p125 = scmp.eq.s32.totalorder %s21, 0
      %p126 = por %p124, %p125
      %p127 = scmp.ne.s32.totalorder %s113, %s114
      %p128 = scmp.eq.s32.totalorder %s22, 3
      %p129 = por %p127, %p128
      %p131 = scmp.ne.s32.totalorder %s114, %s130
      %p132 = scmp.eq.s32.totalorder %s22, 0
      %p133 = por %p131, %p132
      %s134 = ssub.s32 %s23, %s49
      %s135 = ssub.s32 %s26, %s37
      %s136 = sor.u32 %s134, %s135
      %s137 = ssub.s32 %s25, %s41
      %s138 = sor.u32 %s136, %s137
      %p139 = scmp.eq.s32.totalorder %s138, 0
      %s141 = sadd.s32 %s140, 1
      %s142 = scalar_select %p139, %s140, %s141
      %p145 = pneg %p139
      %p146 = scmp.eq.s32.totalorder %s16, 3
      %p147 = por %p145, %p146
      %p148 = scmp.ne.s32.totalorder %s140, %s143
      %p149 = scmp.eq.s32.totalorder %s16, 0
      %p150 = por %p148, %p149
      %p151 = scmp.ne.s32.totalorder %s140, %s143
      %p152 = scmp.eq.s32.totalorder %s21, 3
      %p153 = por %p151, %p152
      %p154 = scmp.ne.s32.totalorder %s143, %s144
      %p155 = scmp.eq.s32.totalorder %s21, 0
      %p156 = por %p154, %p155
      %p157 = scmp.ne.s32.totalorder %s143, %s144
      %p158 = scmp.eq.s32.totalorder %s22, 3
      %p159 = por %p157, %p158
      %p161 = scmp.ne.s32.totalorder %s144, %s160
      %p162 = scmp.eq.s32.totalorder %s22, 0
      %p163 = por %p161, %p162
      %s164 = ssub.s32 %s23, %s49
      %s165 = ssub.s32 %s25, %s41
      %s166 = sor.u32 %s164, %s165
      %p167 = scmp.eq.s32.totalorder %s166, 0
      %s169 = sadd.s32 %s168, 1
      %s170 = scalar_select %p167, %s168, %s169
      %p173 = pneg %p167
      %p174 = scmp.eq.s32.totalorder %s16, 3
      %p175 = por %p173, %p174
      %p176 = scmp.ne.s32.totalorder %s168, %s171
      %p177 = scmp.eq.s32.totalorder %s16, 0
      %p178 = por %p176, %p177
      %p179 = scmp.ne.s32.totalorder %s168, %s171
      %p180 = scmp.eq.s32.totalorder %s21, 3
      %p181 = por %p179, %p180
      %p182 = scmp.ne.s32.totalorder %s171, %s172
      %p183 = scmp.eq.s32.totalorder %s21, 0
      %p184 = por %p182, %p183
      %p185 = scmp.ne.s32.totalorder %s171, %s172
      %p186 = scmp.eq.s32.totalorder %s22, 3
      %p187 = por %p185, %p186
      %p189 = scmp.ne.s32.totalorder %s172, %s188
      %p190 = scmp.eq.s32.totalorder %s22, 0
      %p191 = por %p189, %p190
      %s192 = ssub.s32 %s23, %s49
      %s193 = ssub.s32 %s24, %s45
      %s194 = sor.u32 %s192, %s193
      %s195 = ssub.s32 %s25, %s41
      %s196 = sor.u32 %s194, %s195
      %p197 = scmp.eq.s32.totalorder %s196, 0
      %s199 = sadd.s32 %s198, 1
      %s200 = scalar_select %p197, %s198, %s199
      %p203 = pneg %p197
      %p204 = scmp.eq.s32.totalorder %s16, 3
      %p205 = por %p203, %p204
      %p206 = scmp.ne.s32.totalorder %s198, %s201
      %p207 = scmp.eq.s32.totalorder %s16, 0
      %p208 = por %p206, %p207
      %p209 = scmp.ne.s32.totalorder %s198, %s201
      %p210 = scmp.eq.s32.totalorder %s21, 3
      %p211 = por %p209, %p210
      %p212 = scmp.ne.s32.totalorder %s201, %s202
      %p213 = scmp.eq.s32.totalorder %s21, 0
      %p214 = por %p212, %p213
      %p215 = scmp.ne.s32.totalorder %s201, %s202
      %p216 = scmp.eq.s32.totalorder %s22, 3
      %p217 = por %p215, %p216
      %p219 = scmp.ne.s32.totalorder %s202, %s218
      %p220 = scmp.eq.s32.totalorder %s22, 0
      %p221 = por %p219, %p220
      %p222 = scmp.le.s32.totalorder 1, %s16
      %p223 = scmp.lt.s32.totalorder %s16, 5
      %p224 = pnand %p222, %p223
      %p225 = pneg %p224
      // Predicated region
      $region9: #{tpu_custom_call.1} parent=5 // pred_check
        _
      $region10: #{tpu_custom_call.1} parent=5 // pred_check_branch
        %227 = sbr.rel (%p224) target = $region12
      $region11: #{tpu_custom_call.1} parent=5 // pred_region
        %s228 = ssub.s32 %s16, 1
        // Predicated region
        $region13: #{tpu_custom_call.1} parent=11 // pred_check
          %p229 = pneg %p70
        $region14: #{tpu_custom_call.1} parent=11 // pred_check_branch
          %231 = sbr.rel (%p229) target = $region16
        $region15: #{tpu_custom_call.1} parent=11 // pred_region
          %s232 = smul.u32 2, %s28
          %234 = vsyncadd [#allocation3], 0
          %s235 = sadd.s32 %s30, %s232
          %s236 = smul.addr %s235, 8
          %s237 = scalar_lea.hbm %s0, %s236
          %s238 = sshll.u32 %s237, 4
          %s239 = int_to_ptr.hbm [resolvable:$true] %s238
          %s240 = sshll.u32 [#allocation2], 4
          %s241 = int_to_ptr.vmem [resolvable:$true] %s240
          %246 = dma.hbm_to_vmem [thread:$0]  %s239, 256, %s241, [#allocation3], 128, 128, 8
        $region16: #{tpu_custom_call.1} parent=11 // pred_fallthru
          _
        // Predicated region
        $region17: #{tpu_custom_call.1} parent=11 // pred_check
          %p247 = pneg %p98
        $region18: #{tpu_custom_call.1} parent=11 // pred_check_branch
          %249 = sbr.rel (%p247) target = $region20
        $region19: #{tpu_custom_call.1} parent=11 // pred_region
          %s250 = smul.u32 2, %s28
          %252 = vsyncadd [#allocation6], 0
          %s253 = sadd.s32 %s30, %s250
          %s254 = smul.addr %s253, 8
          %s255 = scalar_lea.hbm %s1, %s254
          %s256 = sshll.u32 %s255, 4
          %s257 = int_to_ptr.hbm [resolvable:$true] %s256
          %s258 = sshll.u32 [#allocation5], 4
          %s259 = int_to_ptr.vmem [resolvable:$true] %s258
          %264 = dma.hbm_to_vmem [thread:$0]  %s257, 256, %s259, [#allocation6], 128, 128, 8
        $region20: #{tpu_custom_call.1} parent=11 // pred_fallthru
          _
      $region12: #{tpu_custom_call.1} parent=5 // pred_fallthru
        _
      %p265 = scmp.lt.s32.totalorder %s16, 4
      // Predicated region
      $region21: #{tpu_custom_call.1} parent=5 // pred_check
        %p266 = pneg %p265
      $region22: #{tpu_custom_call.1} parent=5 // pred_check_branch
        %268 = sbr.rel (%p266) target = $region24
      $region23: #{tpu_custom_call.1} parent=5 // pred_region
        // Predicated region
        $region25: #{tpu_custom_call.1} parent=23 // pred_check
          %p269 = pneg %p120
        $region26: #{tpu_custom_call.1} parent=23 // pred_check_branch
          %271 = sbr.rel (%p269) target = $region28
        $region27: #{tpu_custom_call.1} parent=23 // pred_region
          %s272 = sand.u32 %s16, 1
          %s273 = scalar_lea.sflag [#allocation3], %s272
          %s274 = sand.u32 %s110, 1
          %s275 = scalar_lea.vmem [#allocation7], %s274
          %277 = vsyncadd %s273, 0
          %s278 = sadd.s32 %s26, %s23
          %s279 = scalar_lea.hbm %s2, %s278
          %s281 = sshll.u32 %s279, 4
          %s282 = int_to_ptr.hbm [resolvable:$true] %s281
          %s283 = sshll.u32 %s275, 4
          %s284 = int_to_ptr.vmem [resolvable:$true] %s283
          %286 = dma.hbm_to_vmem [thread:$0]  %s282, 16, %s284, %s273
        $region28: #{tpu_custom_call.1} parent=23 // pred_fallthru
          _
        // Predicated region
        $region29: #{tpu_custom_call.1} parent=23 // pred_check
          %p287 = pneg %p150
        $region30: #{tpu_custom_call.1} parent=23 // pred_check_branch
          %289 = sbr.rel (%p287) target = $region32
        $region31: #{tpu_custom_call.1} parent=23 // pred_region
          %s290 = sand.u32 %s16, 1
          %s291 = scalar_lea.sflag [#allocation3], %s290
          %s292 = sand.u32 %s140, 1
          %s293 = smul.addr %s292, 32
          %s294 = scalar_lea.vmem [#allocation8], %s293
          %s295 = smul.u32 4, %s26
          %297 = vsyncadd %s291, 0
          %s298 = sadd.s32 %s25, %s295
          %s299 = smul.addr %s23, 4
          %s300 = sadd.s32 %s298, %s299
          %s301 = smul.addr %s300, 8
          %s302 = scalar_lea.hbm %s3, %s301
          %s303 = sshll.u32 %s302, 4
          %s304 = int_to_ptr.hbm [resolvable:$true] %s303
          %s305 = sshll.u32 %s294, 4
          %s306 = int_to_ptr.vmem [resolvable:$true] %s305
          %311 = dma.hbm_to_vmem [thread:$0]  %s304, 512, %s306, %s291, 128, 128, 8
        $region32: #{tpu_custom_call.1} parent=23 // pred_fallthru
          _
        // Predicated region
        $region33: #{tpu_custom_call.1} parent=23 // pred_check
          %p312 = pneg %p178
        $region34: #{tpu_custom_call.1} parent=23 // pred_check_branch
          %314 = sbr.rel (%p312) target = $region36
        $region35: #{tpu_custom_call.1} parent=23 // pred_region
          %s315 = sand.u32 %s16, 1
          %s316 = scalar_lea.sflag [#allocation3], %s315
          %s317 = sand.u32 %s168, 1
          %s318 = scalar_lea.vmem [#allocation9], %s317
          %320 = vsyncadd %s316, 0
          %s321 = sadd.s32 %s25, %s23
          %s322 = scalar_lea.hbm %s4, %s321
          %s324 = sshll.u32 %s322, 4
          %s325 = int_to_ptr.hbm [resolvable:$true] %s324
          %s326 = sshll.u32 %s318, 4
          %s327 = int_to_ptr.vmem [resolvable:$true] %s326
          %329 = dma.hbm_to_vmem [thread:$0]  %s325, 16, %s327, %s316
        $region36: #{tpu_custom_call.1} parent=23 // pred_fallthru
          _
      $region24: #{tpu_custom_call.1} parent=5 // pred_fallthru
        _
      %p330 = scmp.le.s32.totalorder 1, %s16
      %p331 = scmp.lt.s32.totalorder %s16, 5
      %p332 = pnand %p330, %p331
      %p333 = pneg %p332
      // Predicated region
      $region37: #{tpu_custom_call.1} parent=5 // pred_check
        _
      $region38: #{tpu_custom_call.1} parent=5 // pred_check_branch
        %335 = sbr.rel (%p332) target = $region40
      $region39: #{tpu_custom_call.1} parent=5 // pred_region
        %s336 = ssub.s32 %s16, 1
        // Predicated region
        $region41: #{tpu_custom_call.1} parent=39 // pred_check
          %p337 = pneg %p70
        $region42: #{tpu_custom_call.1} parent=39 // pred_check_branch
          %339 = sbr.rel (%p337) target = $region44
        $region43: #{tpu_custom_call.1} parent=39 // pred_region
          %341 = dma.done [#allocation3], 256
        $region44: #{tpu_custom_call.1} parent=39 // pred_fallthru
          _
        // Predicated region
        $region45: #{tpu_custom_call.1} parent=39 // pred_check
          %p342 = pneg %p98
        $region46: #{tpu_custom_call.1} parent=39 // pred_check_branch
          %344 = sbr.rel (%p342) target = $region48
        $region47: #{tpu_custom_call.1} parent=39 // pred_region
          %346 = dma.done [#allocation6], 256
        $region48: #{tpu_custom_call.1} parent=39 // pred_fallthru
          _
        %s347 = sand.u32 %s21, 1
        %s348 = scalar_lea.sflag [#allocation3], %s347
        %s349 = sand.u32 %s113, 1
        %s350 = scalar_lea.vmem [#allocation7], %s349
        // Predicated region
        $region49: #{tpu_custom_call.1} parent=39 // pred_check
          %p351 = pneg %p126
        $region50: #{tpu_custom_call.1} parent=39 // pred_check_branch
          %353 = sbr.rel (%p351) target = $region52
        $region51: #{tpu_custom_call.1} parent=39 // pred_region
          %355 = dma.done %s348, 16
        $region52: #{tpu_custom_call.1} parent=39 // pred_fallthru
          _
        %s356 = sand.u32 %s21, 1
        %s357 = scalar_lea.sflag [#allocation3], %s356
        %s358 = sand.u32 %s143, 1
        %s359 = smul.addr %s358, 32
        %s360 = scalar_lea.vmem [#allocation8], %s359
        // Predicated region
        $region53: #{tpu_custom_call.1} parent=39 // pred_check
          %p361 = pneg %p156
        $region54: #{tpu_custom_call.1} parent=39 // pred_check_branch
          %363 = sbr.rel (%p361) target = $region56
        $region55: #{tpu_custom_call.1} parent=39 // pred_region
          %365 = dma.done %s357, 512
        $region56: #{tpu_custom_call.1} parent=39 // pred_fallthru
          _
        %s366 = sand.u32 %s21, 1
        %s367 = scalar_lea.sflag [#allocation3], %s366
        %s368 = sand.u32 %s171, 1
        %s369 = scalar_lea.vmem [#allocation9], %s368
        // Predicated region
        $region57: #{tpu_custom_call.1} parent=39 // pred_check
          %p370 = pneg %p184
        $region58: #{tpu_custom_call.1} parent=39 // pred_check_branch
          %372 = sbr.rel (%p370) target = $region60
        $region59: #{tpu_custom_call.1} parent=39 // pred_region
          %374 = dma.done %s367, 16
        $region60: #{tpu_custom_call.1} parent=39 // pred_fallthru
          _
        %p375 = pneg %p70
        %p376 = pneg %p67
        %p377 = pneg %p98
        %p378 = pneg %p95
        %s379 = sand.u32 %s21, 1
        %s380 = scalar_lea.sflag [#allocation3], %s379
        %s381 = sand.u32 %s113, 1
        %s382 = scalar_lea.vmem [#allocation7], %s381
        %p383 = pneg %p126
        %p384 = pneg %p123
        %s385 = sand.u32 %s21, 1
        %s386 = scalar_lea.sflag [#allocation3], %s385
        %s387 = sand.u32 %s143, 1
        %s388 = smul.addr %s387, 32
        %s389 = scalar_lea.vmem [#allocation8], %s388
        %p390 = pneg %p156
        %p391 = pneg %p153
        %s392 = sand.u32 %s21, 1
        %s393 = scalar_lea.sflag [#allocation3], %s392
        %s394 = sand.u32 %s171, 1
        %s395 = scalar_lea.vmem [#allocation9], %s394
        %p396 = pneg %p184
        %p397 = pneg %p181
        %p398 = pneg %p214
        %p399 = pneg %p211
        %s400 = sand.u32 %s201, 1
        %s401 = scalar_lea.sflag [#allocation4], %s400
        %s402 = sand.u32 %s201, 1
        %s403 = smul.addr %s402, 16
        %s404 = scalar_lea.vmem [#allocation10], %s403
        %s405 = smul.u32 2, %s28
        %s406 = smul.u32 2, %s28
        %s407 = smul.u32 4, %s30
        %s408 = smul.u32 2, %s28
        %v409 = vld [vmem:[#allocation2] sm:$0xff]
        %v410 = vld [vmem:[#allocation2 + $0x8] sm:$0xff]
        %v411 = vld [vmem:[#allocation5] sm:$0xff]
        %v412 = vld [vmem:[#allocation5 + $0x8] sm:$0xff]
        %v413 = vld [vmem:[%s350] sm:$0x1]
        %v415 = vperm.slane %v413, 0
        %v417 = vmul.f32 %v411, %v415
        %v418 = vmul.f32 %v412, %v415
        %v419 = vadd.f32 %v409, %v417
        %v420 = vadd.f32 %v410, %v418
        %v421 = vld [vmem:[%s360] sm:$0xff]
        %v422 = vld [vmem:[%s360 + $0x8] sm:$0xff]
        %v423 = vld [vmem:[%s360 + $0x10] sm:$0xff]
        %v424 = vld [vmem:[%s360 + $0x18] sm:$0xff]
        %v425 = vld [vmem:[%s369] sm:$0x1]
        %v427 = vperm.slane %v425, 0
        %vm429 = vcmask 261120
        %v431 = vsel %vm429, %v419, 0
        %v434 = vsel %vm429, %v420, 0
        %436 = vmatpush.msra.mxu0 0.0
        %437 = vmatpush.msra.mxu0 0.0
        %438 = vmatpush.msra.mxu0 0.0
        %439 = vmatpush.msra.mxu0 0.0
        %440 = vmatpush.msra.mxu0 0.0
        %441 = vmatpush.msra.mxu0 0.0
        %442 = vmatpush.msra.mxu0 0.0
        %443 = vmatpush.msra.mxu0 0.0
        %444 = vmatpush.msra.mxu0 0.0
        %445 = vmatpush.msra.mxu0 0.0
        %446 = vmatpush.msra.mxu0 0.0
        %447 = vmatpush.msra.mxu0 0.0
        %v448 = vand.u32 %v424, 4294901760
        %449 = vmatpush.msra.mxu0 %v448
        %v450 = vand.u32 %v423, 4294901760
        %451 = vmatpush.msra.mxu0 %v450
        %v452 = vand.u32 %v422, 4294901760
        %453 = vmatpush.msra.mxu0 %v452
        %v454 = vand.u32 %v421, 4294901760
        %455 = vmatpush.msra.mxu0 %v454
        %v456 = vand.u32 %v431, 4294901760
        %v457 = vsub.f32 %v431, %v456
        %v458 = vand.u32 %v457, 4294901760
        %v459 = vsub.f32 %v457, %v458
        %v460 = vand.u32 %v459, 4294901760
        %461 = vmatmul.f32.gmra.mxu0 %v460
        %v462 = vpop.f32.mrf.mxu0
        %v463 = vadd.f32 %v427, %v462
        %v464 = vand.u32 %v434, 4294901760
        %v465 = vsub.f32 %v434, %v464
        %v466 = vand.u32 %v465, 4294901760
        %v467 = vsub.f32 %v465, %v466
        %v468 = vand.u32 %v467, 4294901760
        %469 = vmatmul.f32.gmra.mxu0 %v468
        %v470 = vpop.f32.mrf.mxu0
        %v471 = vadd.f32 %v427, %v470
        %472 = vdwg.mxu0
        %473 = vmatpush.msra.mxu0 0.0
        %474 = vmatpush.msra.mxu0 0.0
        %475 = vmatpush.msra.mxu0 0.0
        %476 = vmatpush.msra.mxu0 0.0
        %477 = vmatpush.msra.mxu0 0.0
        %478 = vmatpush.msra.mxu0 0.0
        %479 = vmatpush.msra.mxu0 0.0
        %480 = vmatpush.msra.mxu0 0.0
        %481 = vmatpush.msra.mxu0 0.0
        %482 = vmatpush.msra.mxu0 0.0
        %483 = vmatpush.msra.mxu0 0.0
        %484 = vmatpush.msra.mxu0 0.0
        %v485 = vand.u32 %v424, 4294901760
        %v486 = vsub.f32 %v424, %v485
        %v487 = vand.u32 %v486, 4294901760
        %v488 = vsub.f32 %v486, %v487
        %v489 = vand.u32 %v488, 4294901760
        %490 = vmatpush.msra.mxu0 %v489
        %v491 = vand.u32 %v423, 4294901760
        %v492 = vsub.f32 %v423, %v491
        %v493 = vand.u32 %v492, 4294901760
        %v494 = vsub.f32 %v492, %v493
        %v495 = vand.u32 %v494, 4294901760
        %496 = vmatpush.msra.mxu0 %v495
        %v497 = vand.u32 %v422, 4294901760
        %v498 = vsub.f32 %v422, %v497
        %v499 = vand.u32 %v498, 4294901760
        %v500 = vsub.f32 %v498, %v499
        %v501 = vand.u32 %v500, 4294901760
        %502 = vmatpush.msra.mxu0 %v501
        %v503 = vand.u32 %v421, 4294901760
        %v504 = vsub.f32 %v421, %v503
        %v505 = vand.u32 %v504, 4294901760
        %v506 = vsub.f32 %v504, %v505
        %v507 = vand.u32 %v506, 4294901760
        %508 = vmatpush.msra.mxu0 %v507
        %v509 = vand.u32 %v431, 4294901760
        %510 = vmatmul.f32.gmra.mxu0 %v509
        %v511 = vpop.f32.mrf.mxu0
        %v512 = vadd.f32 %v463, %v511
        %v513 = vand.u32 %v434, 4294901760
        %514 = vmatmul.f32.gmra.mxu0 %v513
        %v515 = vpop.f32.mrf.mxu0
        %v516 = vadd.f32 %v471, %v515
        %517 = vdwg.mxu0
        %518 = vmatpush.msra.mxu0 0.0
        %519 = vmatpush.msra.mxu0 0.0
        %520 = vmatpush.msra.mxu0 0.0
        %521 = vmatpush.msra.mxu0 0.0
        %522 = vmatpush.msra.mxu0 0.0
        %523 = vmatpush.msra.mxu0 0.0
        %524 = vmatpush.msra.mxu0 0.0
        %525 = vmatpush.msra.mxu0 0.0
        %526 = vmatpush.msra.mxu0 0.0
        %527 = vmatpush.msra.mxu0 0.0
        %528 = vmatpush.msra.mxu0 0.0
        %529 = vmatpush.msra.mxu0 0.0
        %v530 = vand.u32 %v424, 4294901760
        %v531 = vsub.f32 %v424, %v530
        %532 = vmatpush.msra.mxu0 %v531
        %v533 = vand.u32 %v423, 4294901760
        %v534 = vsub.f32 %v423, %v533
        %535 = vmatpush.msra.mxu0 %v534
        %v536 = vand.u32 %v422, 4294901760
        %v537 = vsub.f32 %v422, %v536
        %538 = vmatpush.msra.mxu0 %v537
        %v539 = vand.u32 %v421, 4294901760
        %v540 = vsub.f32 %v421, %v539
        %541 = vmatpush.msra.mxu0 %v540
        %v542 = vand.u32 %v431, 4294901760
        %v543 = vsub.f32 %v431, %v542
        %544 = vmatmul.f32.gmra.mxu0 %v543
        %v545 = vpop.f32.mrf.mxu0
        %v546 = vadd.f32 %v512, %v545
        %v547 = vand.u32 %v434, 4294901760
        %v548 = vsub.f32 %v434, %v547
        %549 = vmatmul.f32.gmra.mxu0 %v548
        %v550 = vpop.f32.mrf.mxu0
        %v551 = vadd.f32 %v516, %v550
        %552 = vdwg.mxu0
        %553 = vmatpush.msra.mxu0 0.0
        %554 = vmatpush.msra.mxu0 0.0
        %555 = vmatpush.msra.mxu0 0.0
        %556 = vmatpush.msra.mxu0 0.0
        %557 = vmatpush.msra.mxu0 0.0
        %558 = vmatpush.msra.mxu0 0.0
        %559 = vmatpush.msra.mxu0 0.0
        %560 = vmatpush.msra.mxu0 0.0
        %561 = vmatpush.msra.mxu0 0.0
        %562 = vmatpush.msra.mxu0 0.0
        %563 = vmatpush.msra.mxu0 0.0
        %564 = vmatpush.msra.mxu0 0.0
        %v565 = vand.u32 %v424, 4294901760
        %566 = vmatpush.msra.mxu0 %v565
        %v567 = vand.u32 %v423, 4294901760
        %568 = vmatpush.msra.mxu0 %v567
        %v569 = vand.u32 %v422, 4294901760
        %570 = vmatpush.msra.mxu0 %v569
        %v571 = vand.u32 %v421, 4294901760
        %572 = vmatpush.msra.mxu0 %v571
        %v573 = vand.u32 %v431, 4294901760
        %v574 = vsub.f32 %v431, %v573
        %v575 = vand.u32 %v574, 4294901760
        %576 = vmatmul.f32.gmra.mxu0 %v575
        %v577 = vpop.f32.mrf.mxu0
        %v578 = vadd.f32 %v546, %v577
        %v579 = vand.u32 %v434, 4294901760
        %v580 = vsub.f32 %v434, %v579
        %v581 = vand.u32 %v580, 4294901760
        %582 = vmatmul.f32.gmra.mxu0 %v581
        %v583 = vpop.f32.mrf.mxu0
        %v584 = vadd.f32 %v551, %v583
        %585 = vdwg.mxu0
        %586 = vmatpush.msra.mxu0 0.0
        %587 = vmatpush.msra.mxu0 0.0
        %588 = vmatpush.msra.mxu0 0.0
        %589 = vmatpush.msra.mxu0 0.0
        %590 = vmatpush.msra.mxu0 0.0
        %591 = vmatpush.msra.mxu0 0.0
        %592 = vmatpush.msra.mxu0 0.0
        %593 = vmatpush.msra.mxu0 0.0
        %594 = vmatpush.msra.mxu0 0.0
        %595 = vmatpush.msra.mxu0 0.0
        %596 = vmatpush.msra.mxu0 0.0
        %597 = vmatpush.msra.mxu0 0.0
        %v598 = vand.u32 %v424, 4294901760
        %v599 = vsub.f32 %v424, %v598
        %v600 = vand.u32 %v599, 4294901760
        %601 = vmatpush.msra.mxu0 %v600
        %v602 = vand.u32 %v423, 4294901760
        %v603 = vsub.f32 %v423, %v602
        %v604 = vand.u32 %v603, 4294901760
        %605 = vmatpush.msra.mxu0 %v604
        %v606 = vand.u32 %v422, 4294901760
        %v607 = vsub.f32 %v422, %v606
        %v608 = vand.u32 %v607, 4294901760
        %609 = vmatpush.msra.mxu0 %v608
        %v610 = vand.u32 %v421, 4294901760
        %v611 = vsub.f32 %v421, %v610
        %v612 = vand.u32 %v611, 4294901760
        %613 = vmatpush.msra.mxu0 %v612
        %v614 = vand.u32 %v431, 4294901760
        %615 = vmatmul.f32.gmra.mxu0 %v614
        %v616 = vpop.f32.mrf.mxu0
        %v617 = vadd.f32 %v578, %v616
        %v618 = vand.u32 %v434, 4294901760
        %619 = vmatmul.f32.gmra.mxu0 %v618
        %v620 = vpop.f32.mrf.mxu0
        %v621 = vadd.f32 %v584, %v620
        %622 = vdwg.mxu0
        %623 = vmatpush.msra.mxu0 0.0
        %624 = vmatpush.msra.mxu0 0.0
        %625 = vmatpush.msra.mxu0 0.0
        %626 = vmatpush.msra.mxu0 0.0
        %627 = vmatpush.msra.mxu0 0.0
        %628 = vmatpush.msra.mxu0 0.0
        %629 = vmatpush.msra.mxu0 0.0
        %630 = vmatpush.msra.mxu0 0.0
        %631 = vmatpush.msra.mxu0 0.0
        %632 = vmatpush.msra.mxu0 0.0
        %633 = vmatpush.msra.mxu0 0.0
        %634 = vmatpush.msra.mxu0 0.0
        %v635 = vand.u32 %v424, 4294901760
        %636 = vmatpush.msra.mxu0 %v635
        %v637 = vand.u32 %v423, 4294901760
        %638 = vmatpush.msra.mxu0 %v637
        %v639 = vand.u32 %v422, 4294901760
        %640 = vmatpush.msra.mxu0 %v639
        %v641 = vand.u32 %v421, 4294901760
        %642 = vmatpush.msra.mxu0 %v641
        %v643 = vand.u32 %v431, 4294901760
        %644 = vmatmul.f32.gmra.mxu0 %v643
        %v645 = vpop.f32.mrf.mxu0
        %v646 = vadd.f32 %v617, %v645
        %v647 = vand.u32 %v434, 4294901760
        %648 = vmatmul.f32.gmra.mxu0 %v647
        %v649 = vpop.f32.mrf.mxu0
        %v650 = vadd.f32 %v621, %v649
        %651 = vdwg.mxu0
        %652 = vst.msk [vmem:[%s404] sm:$0xff] %vm429, %v646
        %653 = vst.msk [vmem:[%s404 + $0x8] sm:$0xff] %vm429, %v650
        %s654 = sand.u32 %s201, 1
        %s655 = scalar_lea.sflag [#allocation4], %s654
        %s656 = sand.u32 %s201, 1
        %s657 = smul.addr %s656, 16
        %s658 = scalar_lea.vmem [#allocation10], %s657
        // Predicated region
        $region61: #{tpu_custom_call.1} parent=39 // pred_check
          %p659 = pneg %p211
        $region62: #{tpu_custom_call.1} parent=39 // pred_check_branch
          %661 = sbr.rel (%p659) target = $region64
        $region63: #{tpu_custom_call.1} parent=39 // pred_region
          %s662 = smul.u32 2, %s28
          %664 = vsyncadd %s655, 0
          %s665 = sadd.s32 %s29, %s662
          %s666 = smul.addr %s27, 2
          %s667 = sadd.s32 %s665, %s666
          %s668 = smul.addr %s667, 8
          %s669 = scalar_lea.hbm %s5, %s668
          %s670 = sshll.u32 %s658, 4
          %s671 = int_to_ptr.vmem [resolvable:$true] %s670
          %s672 = sshll.u32 %s669, 4
          %s673 = int_to_ptr.hbm [resolvable:$true] %s672
          %678 = dma.vmem_to_hbm [thread:$0]  %s671, 256, %s673, %s655, 128, 128, 8
        $region64: #{tpu_custom_call.1} parent=39 // pred_fallthru
          _
      $region40: #{tpu_custom_call.1} parent=5 // pred_fallthru
        _
      %p679 = scmp.le.s32.totalorder 2, %s16
      // Predicated region
      $region65: #{tpu_custom_call.1} parent=5 // pred_check
        %p680 = pneg %p679
      $region66: #{tpu_custom_call.1} parent=5 // pred_check_branch
        %682 = sbr.rel (%p680) target = $region68
      $region67: #{tpu_custom_call.1} parent=5 // pred_region
        %s683 = ssub.s32 %s16, 2
        // Predicated region
        $region69: #{tpu_custom_call.1} parent=67 // pred_check
          %p684 = pneg %p217
        $region70: #{tpu_custom_call.1} parent=67 // pred_check_branch
          %686 = sbr.rel (%p684) target = $region72
        $region71: #{tpu_custom_call.1} parent=67 // pred_region
          %s687 = sand.u32 %s202, 1
          %s688 = scalar_lea.sflag [#allocation4], %s687
          %s689 = sand.u32 %s202, 1
          %s690 = smul.addr %s689, 16
          %s691 = scalar_lea.vmem [#allocation10], %s690
          %693 = dma.done %s688, 256
        $region72: #{tpu_custom_call.1} parent=67 // pred_fallthru
          _
      $region68: #{tpu_custom_call.1} parent=5 // pred_fallthru
        _
    $region6: #{tpu_custom_call.1} parent=1 // loop_footer
      %s20 = sadd.s32 1, %s16
    $region7: #{tpu_custom_call.1} parent=1 // loop_footer_branch
      %15 = sbr.rel target = $region3
    $region8: #{tpu_custom_call.1} parent=1 // loop_exit
      _
    %694 = vsyncpa [#allocation3], 1
    %s695 = scalar_lea.sflag [#allocation3], 1
    %696 = vsyncpa %s695, 1
    %697 = vsyncpa [#allocation6], 1
    %698 = vsyncpa [#allocation4], 1
    %s699 = scalar_lea.sflag [#allocation4], 1
    %700 = vsyncpa %s699, 1

</llo_original>
